<compile_context>
chip_gen: v7x
topology: tpu7x:2x2x1
jax: 0.10.0
libtpu: 0.0.40
codegen_flags: <defaults>
</compile_context>

<pallas_src>
import jax
import jax.numpy as jnp
from jax.experimental import pallas as pl
from jax.experimental.pallas import tpu as pltpu


NUM_TABLES = 5
IDX_COLS = 8            # lane-dense index block width (5 valid + 3 sentinel cols)
_SENTINEL = -(1 << 20)  # stays negative after adding any table offset -> never matches


def _round_up(n, m):
    return (n + m - 1) // m * m


def _build_fused_table(tables, dtype):
    """Block-diagonal fused table (K, 5*E); built ONCE at init, not per call."""
    sizes = [int(t.shape[0]) for t in tables]
    E = int(tables[0].shape[1])
    C = NUM_TABLES * E
    K = _round_up(max(sum(sizes), 128), 128)          # 118 -> 128 here
    fused = jnp.zeros((K, C), dtype)
    offs, off = [], 0
    for t, tbl in enumerate(tables):
        fused = fused.at[off:off + sizes[t], t * E:(t + 1) * E].set(tbl.astype(dtype))
        offs.append(off)
        off += sizes[t]
    return fused, tuple(offs)


def _make_kernel(offsets):
    """Row offsets are compile-time Python ints folded into the compares."""

    def kernel(idx_ref, tbl_ref, out_ref):
        tl = idx_ref.shape[0]
        k = tbl_ref.shape[0]
        idx = idx_ref[...]                                        # (TL, 8) int32
        # One shared iota; OR five compares into a single multi-hot matrix.
        iota = jax.lax.broadcasted_iota(jnp.int32, (tl, k), 1)    # (TL, K)
        hot = iota == (idx[:, 0:1] + offsets[0])
        for t in range(1, NUM_TABLES):
            hot = jnp.logical_or(hot, iota == (idx[:, t:t + 1] + offsets[t]))
        onehot = hot.astype(tbl_ref.dtype)                        # (TL, K)
        # One MXU matmul over the block-diagonal table == 5 fused gathers,
        # then one lane-dense full-tile store of (TL, 5*E).
        acc = jnp.dot(onehot, tbl_ref[...], preferred_element_type=jnp.float32)
        out_ref[...] = acc.astype(out_ref.dtype)

    return kernel


def make_checkin_embedding(tables, *, compute_dtype=jnp.float32,
                           out_dtype=None, max_rows_per_tile=2048):
    """Returns a jitted forward fn: x (5, L) int -> (L, 5*E) embeddings.

    The fused table / offsets / kernel are built once here (init time), so the
    per-call path is just index packing + one pallas_call."""
    assert len(tables) == NUM_TABLES
    if out_dtype is None:
        out_dtype = compute_dtype
    fused, offsets = _build_fused_table(tables, compute_dtype)
    K, C = fused.shape
    kernel = _make_kernel(offsets)

    def forward(x):
        # x rows must lie in [0, vocab_k] (vocab_k == zeroed padding row).
        # Out-of-range indices silently select a neighbouring table's band;
        # validate upstream if inputs are untrusted (PyTorch would raise).
        L = int(x.shape[1])
        Lr = _round_up(max(L, 8), 8)
        # One grid step for typical sequence lengths; longer sequences get
        # >=2 "parallel" row tiles (shards across v7x's two TensorCores).
        TL = Lr if Lr <= max_rows_per_tile else max_rows_per_tile
        L_pad = _round_up(L, TL)

        idx_block = jnp.full((L_pad, IDX_COLS), _SENTINEL, jnp.int32)
        idx_block = idx_block.at[:L, :NUM_TABLES].set(x.astype(jnp.int32).T)

        out = pl.pallas_call(
            kernel,
            out_shape=jax.ShapeDtypeStruct((L_pad, C), out_dtype),
            grid_spec=pltpu.PrefetchScalarGridSpec(
                num_scalar_prefetch=0,
                grid=(L_pad // TL,),
                in_specs=[
                    pl.BlockSpec((TL, IDX_COLS), lambda i: (i, 0)),  # row-tiled idx
                    # Constant block index -> table stays VMEM-resident across
                    # the grid.  At K=128/C=160 the second pipeline buffer is
                    # only 80 KiB, so default buffering is left alone here.
                    pl.BlockSpec((K, C), lambda i: (0, 0)),
                ],
                out_specs=pl.BlockSpec((TL, C), lambda i: (i, 0)),
            ),
            compiler_params=pltpu.CompilerParams(
                dimension_semantics=("parallel",)),
        )(idx_block, fused)
        return out[:L]

    return jax.jit(forward)


def _make_table(key, vocab, embed_size):
    """nn.Embedding(vocab+1, E, padding_idx=vocab): N(0,1) init, padding row zeroed."""
    tbl = jax.random.normal(key, (vocab + 1, embed_size), dtype=jnp.float32)
    return tbl.at[vocab].set(0.0)


def _reference(x, tables):
    embs = [jnp.take(tbl, x[i].astype(jnp.int32), axis=0)
            for i, tbl in enumerate(tables)]
    return jnp.concatenate(embs, axis=1)


if __name__ == "__main__":
    f_embed_size = 32
    vocab_size = {"POI": 50, "cat": 12, "user": 20, "hour": 24, "day": 7}
    names = ["POI", "cat", "user", "hour", "day"]

    key = jax.random.PRNGKey(0)
    k_tbl, k_idx1, k_idx2 = jax.random.split(key, 3)
    tkeys = jax.random.split(k_tbl, NUM_TABLES)
    tables = [_make_table(k, vocab_size[n], f_embed_size) for k, n in zip(tkeys, names)]

    def make_indices(base_key, seq_len):
        # indices in [0, vocab_k] inclusive (vocab_k == padding_idx -> zero row)
        rows = []
        for ik, n in zip(jax.random.split(base_key, NUM_TABLES), names):
            rows.append(jax.random.randint(ik, (seq_len,), 0, vocab_size[n] + 1,
                                           dtype=jnp.int32))
        return jnp.stack(rows, axis=0)  # (5, L)

    # exact f32 path (fused table built once at construction)
    forward_f32 = make_checkin_embedding(tables)

    # small sequence, single grid step
    x_small = make_indices(k_idx1, 8)
    out_small = jax.block_until_ready(forward_f32(x_small))
    ref_small = _reference(x_small, tables)
    assert out_small.shape == (8, NUM_TABLES * f_embed_size), out_small.shape
    assert jnp.allclose(out_small, ref_small, atol=1e-5, rtol=1e-5), "mismatch (L=8)"

    # longer sequence: still ONE grid step with the raised tile size
    x_big = make_indices(k_idx2, 300)
    out_big = jax.block_until_ready(forward_f32(x_big))
    ref_big = _reference(x_big, tables)
    assert out_big.shape == (300, NUM_TABLES * f_embed_size), out_big.shape
    assert jnp.allclose(out_big, ref_big, atol=1e-5, rtol=1e-5), "mismatch (L=300)"

    # multi-tile "parallel" grid path (on v7x this shards across both TCs)
    forward_tiled = make_checkin_embedding(tables, max_rows_per_tile=128)
    out_tiled = jax.block_until_ready(forward_tiled(x_big))
    assert jnp.allclose(out_tiled, ref_big, atol=1e-5, rtol=1e-5), "mismatch (tiled)"

    # optional bf16 fast path (native-rate MXU, half the output DMA); inexact
    forward_bf16 = make_checkin_embedding(tables, compute_dtype=jnp.bfloat16)
    out_bf16 = jax.block_until_ready(forward_bf16(x_big))
    assert out_bf16.dtype == jnp.bfloat16
    assert jnp.allclose(out_bf16.astype(jnp.float32), ref_big,
                        atol=3e-2, rtol=3e-2), "mismatch (bf16)"

    print("KERNEL_OK")
</pallas_src>

<mosaic_0001>
module attributes {stable_mosaic.version = 11 : i64} {
  func.func @kernel(%arg0: i32, %arg1: memref<8x8xi32, #tpu.memory_space<vmem>>, %arg2: memref<128x160xf32, #tpu.memory_space<vmem>>, %arg3: memref<8x160xf32, #tpu.memory_space<vmem>>) attributes {dimension_semantics = [#tpu.dimension_semantics<parallel>], iteration_bounds = array<i64: 1>, scalar_prefetch = 0 : i64, scratch_operands = 0 : i64, tpu.core_type = #tpu.core_type<tc>, window_params = [{transform_indices = @transform_0, window_bounds = array<i64: 8, 8>}, {pipeline_mode = #tpu.pipeline_mode<synchronous>, transform_indices = @transform_1, window_bounds = array<i64: 128, 160>}, {transform_indices = @transform_2, window_bounds = array<i64: 8, 160>}]} {
    %c0 = arith.constant 0 : index
    %c0_0 = arith.constant 0 : index
    %0 = vector.load %arg1[%c0, %c0_0] : memref<8x8xi32, #tpu.memory_space<vmem>>, vector<8x8xi32>
    %1 = tpu.iota {dimensions = array<i32: 1>} : vector<8x128xi32>
    %2 = vector.extract_strided_slice %0 {offsets = [0, 0], sizes = [8, 1], strides = [1, 1]} : vector<8x8xi32> to vector<8x1xi32>
    %c0_i32 = arith.constant 0 : i32
    %3 = vector.broadcast %c0_i32 : i32 to vector<8x1xi32>
    %4 = arith.addi %2, %3 : vector<8x1xi32>
    %5 = vector.broadcast %4 : vector<8x1xi32> to vector<8x128xi32>
    %6 = arith.cmpi eq, %1, %5 : vector<8x128xi32>
    %7 = vector.extract_strided_slice %0 {offsets = [0, 1], sizes = [8, 1], strides = [1, 1]} : vector<8x8xi32> to vector<8x1xi32>
    %c51_i32 = arith.constant 51 : i32
    %8 = vector.broadcast %c51_i32 : i32 to vector<8x1xi32>
    %9 = arith.addi %7, %8 : vector<8x1xi32>
    %10 = vector.broadcast %9 : vector<8x1xi32> to vector<8x128xi32>
    %11 = arith.cmpi eq, %1, %10 : vector<8x128xi32>
    %12 = arith.ori %6, %11 : vector<8x128xi1>
    %13 = vector.extract_strided_slice %0 {offsets = [0, 2], sizes = [8, 1], strides = [1, 1]} : vector<8x8xi32> to vector<8x1xi32>
    %c64_i32 = arith.constant 64 : i32
    %14 = vector.broadcast %c64_i32 : i32 to vector<8x1xi32>
    %15 = arith.addi %13, %14 : vector<8x1xi32>
    %16 = vector.broadcast %15 : vector<8x1xi32> to vector<8x128xi32>
    %17 = arith.cmpi eq, %1, %16 : vector<8x128xi32>
    %18 = arith.ori %12, %17 : vector<8x128xi1>
    %19 = vector.extract_strided_slice %0 {offsets = [0, 3], sizes = [8, 1], strides = [1, 1]} : vector<8x8xi32> to vector<8x1xi32>
    %c85_i32 = arith.constant 85 : i32
    %20 = vector.broadcast %c85_i32 : i32 to vector<8x1xi32>
    %21 = arith.addi %19, %20 : vector<8x1xi32>
    %22 = vector.broadcast %21 : vector<8x1xi32> to vector<8x128xi32>
    %23 = arith.cmpi eq, %1, %22 : vector<8x128xi32>
    %24 = arith.ori %18, %23 : vector<8x128xi1>
    %25 = vector.extract_strided_slice %0 {offsets = [0, 4], sizes = [8, 1], strides = [1, 1]} : vector<8x8xi32> to vector<8x1xi32>
    %c110_i32 = arith.constant 110 : i32
    %26 = vector.broadcast %c110_i32 : i32 to vector<8x1xi32>
    %27 = arith.addi %25, %26 : vector<8x1xi32>
    %28 = vector.broadcast %27 : vector<8x1xi32> to vector<8x128xi32>
    %29 = arith.cmpi eq, %1, %28 : vector<8x128xi32>
    %30 = arith.ori %24, %29 : vector<8x128xi1>
    %31 = arith.extui %30 : vector<8x128xi1> to vector<8x128xi32>
    %32 = arith.sitofp %31 : vector<8x128xi32> to vector<8x128xf32>
    %c0_1 = arith.constant 0 : index
    %c0_2 = arith.constant 0 : index
    %33 = vector.load %arg2[%c0_1, %c0_2] : memref<128x160xf32, #tpu.memory_space<vmem>>, vector<128x160xf32>
    %cst = arith.constant dense<0.000000e+00> : vector<8x160xf32>
    %34 = tpu.matmul %32, %33, %cst {dimension_numbers = #tpu.dot_dimension_numbers<[1], [0], [0], [1], [0, 0, 1, 1], [], []>} : vector<8x128xf32>, vector<128x160xf32>, vector<8x160xf32> -> vector<8x160xf32>
    %c0_3 = arith.constant 0 : index
    %c0_4 = arith.constant 0 : index
    %35 = vector.load %arg3[%c0_3, %c0_4] : memref<8x160xf32, #tpu.memory_space<vmem>>, vector<8x160xf32>
    tpu.vector_store %arg3[%c0_3, %c0_4], %34 {strides = array<i32>} : memref<8x160xf32, #tpu.memory_space<vmem>>, vector<8x160xf32>,
    return
  }
  func.func @transform_0(%arg0: i32) -> (i32, i32) {
    %c0_i32 = arith.constant 0 : i32
    %c0_i32_0 = arith.constant 0 : i32
    return %arg0, %c0_i32 : i32, i32
  }
  func.func @transform_1(%arg0: i32) -> (i32, i32) {
    %c0_i32 = arith.constant 0 : i32
    %c0_i32_0 = arith.constant 0 : i32
    %c0_i32_1 = arith.constant 0 : i32
    return %c0_i32, %c0_i32_0 : i32, i32
  }
  func.func @transform_2(%arg0: i32) -> (i32, i32) {
    %c0_i32 = arith.constant 0 : i32
    %c0_i32_0 = arith.constant 0 : i32
    return %arg0, %c0_i32 : i32, i32
  }
}

</mosaic_0001>

<llo_original>
// kernel: forward.1
$region0: #{forward.1}
  #allocation0 [shape = 'u32[]', space=smem, size = 0x4, offset = 0x4, fixed_abs, tag = 'smem constant byte address 0x4 - core index']
  #allocation1 [shape = 'u32[144,128]{1,0:T(1,128)}', space=vmem, size = 0x12000, scoped, tag = 'internal scratch']
  %s0 = inlined_call_operand.vmem [shape: s32[8,8], index: 0, kind: input, shape index: {}]
  %s1 = inlined_call_operand.hbm [shape: f32[128,160], index: 1, kind: input, shape index: {}]
  %s2 = inlined_call_operand.hbm [shape: f32[8,160], index: 2, kind: output, shape index: {}]
  %s3 = sld [smem:[#allocation0]]
  $region22: #{forward.1} parent=0
    _
  %s5 = ssub.s32 1, %s3
  %s6 = scalar_select 0, %s5, %s3
  $region1: #{forward.1} parent=0
    #allocation2 [shape = 'u8[131072]{0}', space=vmem, size = 0x20000, scoped, tag = 'input window, operand 1, single buffered']
    #allocation3 [shape = 's32[1]{0}', space=sflag, size = 0x4, scoped, tag = 'scoped memory for forward.1']
    #allocation4 [shape = 's32[1]{0}', space=sflag, size = 0x4, scoped, tag = 'scoped memory for forward.1']
    #allocation5 [shape = 'u8[8192]{0}', space=vmem, size = 0x2000, scoped, tag = 'output window, operand 0, single buffered']
    %7 = vsyncpa [#allocation3], 0
    %8 = vsyncpa [#allocation4], 0
    // Predicated region
    $region2: #{forward.1} parent=1 // pred_check
      _
    $region3: #{forward.1} parent=1 // pred_check_branch
      %10 = sbr.rel (0) target = $region5
    $region4: #{forward.1} parent=1 // pred_region
      _
    $region5: #{forward.1} parent=1 // pred_fallthru
      _
    // Predicated region
    $region6: #{forward.1} parent=1 // pred_check
      _
    $region7: #{forward.1} parent=1 // pred_check_branch
      %12 = sbr.rel (0) target = $region9
    $region8: #{forward.1} parent=1 // pred_region
      %s14 = ssub.s32 4096, 4096
      %15 = vsyncadd [#allocation3], %s14
      %s16 = sshll.u32 [#allocation2], 4
      %s17 = int_to_ptr.vmem [resolvable:$true] %s16
      %22 = dma.hbm_to_vmem [thread:$0]  %s1, 4096, %s17, [#allocation3], 256, 256, 16
    $region9: #{forward.1} parent=1 // pred_fallthru
      _
    // Predicated region
    $region10: #{forward.1} parent=1 // pred_check
      _
    $region11: #{forward.1} parent=1 // pred_check_branch
      %24 = sbr.rel (0) target = $region13
    $region12: #{forward.1} parent=1 // pred_region
      %25 = dma.done [#allocation3], 4096
    $region13: #{forward.1} parent=1 // pred_fallthru
      _
    %v26 = vld [vmem:[%s0] sm:$0xff]
    %v27 = vlaneseq
    %v28 = vand.u32 %v27, 127
    %29 = vset.pattern.permute.xlu0 0
    %30 = vperm.xlu0 %29, %v26
    %v31 = vpop.permute.xlu0 %30
    %vm32 = vcmp.eq.s32.totalorder %v28, %v31
    %v33 = vadd.s32 %v26, 51
    %34 = vset.pattern.permute.xlu0 1
    %35 = vperm.xlu0 %34, %v33
    %v36 = vpop.permute.xlu0 %35
    %vm37 = vcmp.eq.s32.totalorder %v28, %v36
    %vm38 = vmor %vm32, %vm37
    %v39 = vadd.s32 %v26, 64
    %40 = vset.pattern.permute.xlu0 2
    %41 = vperm.xlu0 %40, %v39
    %v42 = vpop.permute.xlu0 %41
    %vm43 = vcmp.eq.s32.totalorder %v28, %v42
    %vm44 = vmor %vm38, %vm43
    %v45 = vadd.s32 %v26, 85
    %46 = vset.pattern.permute.xlu0 3
    %47 = vperm.xlu0 %46, %v45
    %v48 = vpop.permute.xlu0 %47
    %vm49 = vcmp.eq.s32.totalorder %v28, %v48
    %vm50 = vmor %vm44, %vm49
    %v51 = vadd.s32 %v26, 110
    %52 = vset.pattern.permute.xlu0 4
    %53 = vperm.xlu0 %52, %v51
    %v54 = vpop.permute.xlu0 %53
    %vm55 = vcmp.eq.s32.totalorder %v28, %v54
    %vm56 = vmor %vm50, %vm55
    %v57 = vsel %vm56, 1, 0
    %v58 = vcvt.s32.f32 %v57
    %v59 = vld [vmem:[#allocation2] sm:$0xff]
    %v60 = vld [vmem:[#allocation2 + $0x8] sm:$0xff]
    %v61 = vld [vmem:[#allocation2 + $0x10] sm:$0xff]
    %v62 = vld [vmem:[#allocation2 + $0x18] sm:$0xff]
    %v63 = vld [vmem:[#allocation2 + $0x20] sm:$0xff]
    %v64 = vld [vmem:[#allocation2 + $0x28] sm:$0xff]
    %v65 = vld [vmem:[#allocation2 + $0x30] sm:$0xff]
    %v66 = vld [vmem:[#allocation2 + $0x38] sm:$0xff]
    %v67 = vld [vmem:[#allocation2 + $0x40] sm:$0xff]
    %v68 = vld [vmem:[#allocation2 + $0x48] sm:$0xff]
    %v69 = vld [vmem:[#allocation2 + $0x50] sm:$0xff]
    %v70 = vld [vmem:[#allocation2 + $0x58] sm:$0xff]
    %v71 = vld [vmem:[#allocation2 + $0x60] sm:$0xff]
    %v72 = vld [vmem:[#allocation2 + $0x68] sm:$0xff]
    %v73 = vld [vmem:[#allocation2 + $0x70] sm:$0xff]
    %v74 = vld [vmem:[#allocation2 + $0x78] sm:$0xff]
    %v75 = vld [vmem:[#allocation2 + $0x80] sm:$0xff]
    %v76 = vld [vmem:[#allocation2 + $0x88] sm:$0xff]
    %v77 = vld [vmem:[#allocation2 + $0x90] sm:$0xff]
    %v78 = vld [vmem:[#allocation2 + $0x98] sm:$0xff]
    %v79 = vld [vmem:[#allocation2 + $0xa0] sm:$0xff]
    %v80 = vld [vmem:[#allocation2 + $0xa8] sm:$0xff]
    %v81 = vld [vmem:[#allocation2 + $0xb0] sm:$0xff]
    %v82 = vld [vmem:[#allocation2 + $0xb8] sm:$0xff]
    %v83 = vld [vmem:[#allocation2 + $0xc0] sm:$0xff]
    %v84 = vld [vmem:[#allocation2 + $0xc8] sm:$0xff]
    %v85 = vld [vmem:[#allocation2 + $0xd0] sm:$0xff]
    %v86 = vld [vmem:[#allocation2 + $0xd8] sm:$0xff]
    %v87 = vld [vmem:[#allocation2 + $0xe0] sm:$0xff]
    %v88 = vld [vmem:[#allocation2 + $0xe8] sm:$0xff]
    %v89 = vld [vmem:[#allocation2 + $0xf0] sm:$0xff]
    %v90 = vld [vmem:[#allocation2 + $0xf8] sm:$0xff]
    %91 = vmatprep.subr.mxu0 %v60
    %92 = vmatpush1.msra.mxu0 %v59
    %93 = vmatprep.subr.mxu0 %v62
    %94 = vmatpush1.msra.mxu0 %v61
    %95 = vmatprep.subr.mxu0 %v64
    %96 = vmatpush1.msra.mxu0 %v63
    %97 = vmatprep.subr.mxu0 %v66
    %98 = vmatpush1.msra.mxu0 %v65
    %99 = vmatprep.subr.mxu0 %v68
    %100 = vmatpush1.msra.mxu0 %v67
    %101 = vmatprep.subr.mxu0 %v70
    %102 = vmatpush1.msra.mxu0 %v69
    %103 = vmatprep.subr.mxu0 %v72
    %104 = vmatpush1.msra.mxu0 %v71
    %105 = vmatprep.subr.mxu0 %v74
    %106 = vmatpush1.msra.mxu0 %v73
    %107 = vmatprep.subr.mxu0 %v76
    %108 = vmatpush1.msra.mxu0 %v75
    %109 = vmatprep.subr.mxu0 %v78
    %110 = vmatpush1.msra.mxu0 %v77
    %111 = vmatprep.subr.mxu0 %v80
    %112 = vmatpush1.msra.mxu0 %v79
    %113 = vmatprep.subr.mxu0 %v82
    %114 = vmatpush1.msra.mxu0 %v81
    %115 = vmatprep.subr.mxu0 %v84
    %116 = vmatpush1.msra.mxu0 %v83
    %117 = vmatprep.subr.mxu0 %v86
    %118 = vmatpush1.msra.mxu0 %v85
    %119 = vmatprep.subr.mxu0 %v88
    %120 = vmatpush1.msra.mxu0 %v87
    %121 = vmatprep.subr.mxu0 %v90
    %122 = vmatpush1.msra.mxu0 %v89
    %123 = vmatprep.subr.mxu0 0.0
    %124 = vmatpush1.msra.mxu0 0.0
    %125 = vmatprep.subr.mxu0 0.0
    %126 = vmatpush1.msra.mxu0 0.0
    %127 = vmatprep.subr.mxu0 0.0
    %128 = vmatpush1.msra.mxu0 0.0
    %129 = vmatprep.subr.mxu0 0.0
    %130 = vmatpush1.msra.mxu0 0.0
    %131 = vmatprep.subr.mxu0 0.0
    %132 = vmatpush1.msra.mxu0 0.0
    %133 = vmatprep.subr.mxu0 0.0
    %134 = vmatpush1.msra.mxu0 0.0
    %135 = vmatprep.subr.mxu0 0.0
    %136 = vmatpush1.msra.mxu0 0.0
    %137 = vmatprep.subr.mxu0 0.0
    %138 = vmatpush1.msra.mxu0 0.0
    %139 = vmatprep.subr.mxu0 0.0
    %140 = vmatpush1.msra.mxu0 0.0
    %141 = vmatprep.subr.mxu0 0.0
    %142 = vmatpush1.msra.mxu0 0.0
    %143 = vmatprep.subr.mxu0 0.0
    %144 = vmatpush1.msra.mxu0 0.0
    %145 = vmatprep.subr.mxu0 0.0
    %146 = vmatpush1.msra.mxu0 0.0
    %147 = vmatprep.subr.mxu0 0.0
    %148 = vmatpush1.msra.mxu0 0.0
    %149 = vmatprep.subr.mxu0 0.0
    %150 = vmatpush1.msra.mxu0 0.0
    %151 = vmatprep.subr.mxu0 0.0
    %152 = vmatpush1.msra.mxu0 0.0
    %153 = vmatprep.subr.mxu0 0.0
    %154 = vmatpush1.msra.mxu0 0.0
    %155 = vmatprep.mubr.f32.mxu0 0.0
    %156 = vmatmul.mubr.f32.gmra.mrb[0].mxu0 %v58
    %v157 = vpop.f32.mrb[0].mxu0
    %v158 = vadd.f32 0.0, %v157
    %v159 = vpop.f32.mrb[0].mxu0
    %v160 = vadd.f32 0.0, %v159
    %161 = vdwg.mxu0
    %162 = vst [vmem:[#allocation5] sm:$0xff] %v158
    %vm163 = vcmask 261120
    %164 = vst.msk [vmem:[#allocation5 + $0x8] sm:$0xff] %vm163, %v160
    // Predicated region
    $region14: #{forward.1} parent=1 // pred_check
      _
    $region15: #{forward.1} parent=1 // pred_check_branch
      %166 = sbr.rel (0) target = $region17
    $region16: #{forward.1} parent=1 // pred_region
      %s168 = ssub.s32 256, 256
      %169 = vsyncadd [#allocation4], %s168
      %s171 = sshll.u32 [#allocation5], 4
      %s172 = int_to_ptr.vmem [resolvable:$true] %s171
      %174 = dma.vmem_to_hbm [thread:$0]  %s172, 256, %s2, [#allocation4]
    $region17: #{forward.1} parent=1 // pred_fallthru
      _
    // Predicated region
    $region18: #{forward.1} parent=1 // pred_check
      _
    $region19: #{forward.1} parent=1 // pred_check_branch
      %176 = sbr.rel (0) target = $region21
    $region20: #{forward.1} parent=1 // pred_region
      %177 = dma.done [#allocation4], 256
    $region21: #{forward.1} parent=1 // pred_fallthru
      _
    %178 = vsyncpa [#allocation3], 1
    %179 = vsyncpa [#allocation4], 1

</llo_original>
